<compile_context>
chip_gen: v5e
topology: v5e:2x2
jax: 0.10.0
libtpu: 0.0.40
codegen_flags: <defaults>
</compile_context>

<pallas_src>
import functools
import math

import jax
import jax.numpy as jnp
from jax.experimental import pallas as pl
from jax.experimental.pallas import tpu as pltpu


def _round_up(x: int, m: int) -> int:
    return ((x + m - 1) // m) * m


def _tmp_attention2_kernel(
    q_ref, kt_ref, v_ref, mq_ref, mk_ref, valid_ref, wo_ref, bo_ref, out_ref,
    *, no_heads,
):
    m_q = mq_ref[0]        # (tq, 1)  f32
    m_k = mk_ref[0]        # (1,  N)  f32 (padded keys are 0)
    valid = valid_ref[0]   # (1,  N)  f32 (1 for real keys, 0 for padding)

    # Exact multiplicative replacement for softmax(logits + inf*(m_i*m_j - 1)):
    #   m_i == 1 -> per-key weight m_j (masked keys excluded),
    #   m_i == 0 -> the additive bias is constant along the row, i.e. a plain
    #               softmax over all REAL keys -> weight valid_j.
    # Pure VPU broadcast-multiplies; padded keys excluded in both branches.
    m_eff = m_q * m_k + (1.0 - m_q) * valid          # (tq, N) f32

    outs = []
    # TODO(synk): at IPA-scale head counts (12+) switch to
    # lax.fori_loop(..., unroll=True) (or a head grid axis) to bound vreg
    # live ranges; 4 fully-unrolled heads do not spill.
    for h in range(no_heads):
        qh = q_ref[0, h]       # (tq, C) bf16   (2*scale already folded in)
        kh_t = kt_ref[0, h]    # (C,  N) bf16   (pre-transposed outside)
        vh = v_ref[0, h]       # (N,  C) bf16

        # bf16 MXU inputs, f32 accumulation; plain NN matmul (no relayout).
        logits = jnp.dot(qh, kh_t, preferred_element_type=jnp.float32)  # (tq,N)
        logits = logits - jnp.max(logits, axis=-1, keepdims=True)
        p = jnp.exp(logits) * m_eff                  # unnormalized probabilities
        denom = jnp.sum(p, axis=-1, keepdims=True)   # (tq, 1), never 0 (guarded)

        o_h = jnp.dot(p.astype(jnp.bfloat16), vh,
                      preferred_element_type=jnp.float32)               # (tq,C)
        # Normalize AFTER P@V: a (tq, C) multiply instead of a (tq, N) one.
        o_h = o_h * pl.reciprocal(jnp.maximum(denom, 1e-30), approx=True)
        outs.append(o_h)

    # Heads stay in registers; single fused projection over concatenated heads.
    o = jnp.concatenate(outs, axis=-1)                                  # (tq,hc)
    out_ref[0] = (jnp.dot(o, wo_ref[...], preferred_element_type=jnp.float32)
                  + bo_ref[...])

    # TODO(synk): for very large N_res, stream K/V over a kv grid axis with an
    # online softmax (flash style) to bound VMEM to O(tq*tk) on v7x.


def _pick_vmem_limit_bytes() -> int:
    # v5e/v6e: 128 MiB VMEM per core; v7x: 64 MiB.  Leave headroom for the
    # compiler's own scratch; fall back to a v7x-safe value.
    try:
        cap = pltpu.get_tpu_info().vmem_capacity_bytes
        return int(min(cap * 3 // 4, 96 * 1024 * 1024))
    except Exception:
        return 48 * 1024 * 1024


def tmp_attention2(s, z, mask, params, *, no_heads, c_hidden, inf=1e5,
                   q_tile=256):
    """s: [B, N, C_s]; z: [B, N, N, C_z] (unused); mask: [B, N]."""
    del z, inf  # z / Rigid r unused by the forward; inf -> multiplicative mask
    B, N, c_s = s.shape
    hc = no_heads * c_hidden

    # ---- Q and fused K/V projections once, outside the kernel. ----
    # a + a_g == 2*scale*(q k^T); fold 2*scale into q (bias included -> exact).
    scale2 = 2.0 * math.sqrt(1.0 / (3.0 * c_hidden))
    q = (s @ params["wq"] + params["bq"]) * scale2                  # (B,N,hc)
    kv = (s @ params["wkv"] + params["bkv"]).reshape(B, N, no_heads, 2 * c_hidden)
    k = kv[..., :c_hidden]                                          # (B,N,H,C)
    v = kv[..., c_hidden:]                                          # (B,N,H,C)

    # Head-major layouts: per-head operands become leading-axis indexes inside
    # the kernel (no lane slicing), and Q@K^T is a plain NN matmul.
    q4 = q.reshape(B, N, no_heads, c_hidden).transpose(0, 2, 1, 3)  # (B,H,N,C)
    k4 = k.transpose(0, 2, 3, 1)                                    # (B,H,C,N)
    v4 = v.transpose(0, 2, 1, 3)                                    # (B,H,N,C)

    # ---- Pad N to a tile multiple (no O(N^2) tq=N fallback). ----
    tq = min(q_tile, _round_up(N, 8))
    n_pad = _round_up(N, tq)
    pad = n_pad - N
    maskf = mask.astype(jnp.float32)
    if pad:
        q4 = jnp.pad(q4, ((0, 0), (0, 0), (0, pad), (0, 0)))
        k4 = jnp.pad(k4, ((0, 0), (0, 0), (0, 0), (0, pad)))
        v4 = jnp.pad(v4, ((0, 0), (0, 0), (0, pad), (0, 0)))
        maskf = jnp.pad(maskf, ((0, 0), (0, pad)))
    valid = jnp.pad(jnp.ones((1, N), jnp.float32), ((0, 0), (0, pad)))

    # bf16 MXU inputs (f32 accumulation in-kernel); halves K/V DMA and VMEM.
    q4 = q4.astype(jnp.bfloat16)
    k4 = k4.astype(jnp.bfloat16)
    v4 = v4.astype(jnp.bfloat16)

    mask_q = maskf.reshape(B, n_pad, 1)      # query-side orientation
    mask_k = maskf.reshape(B, 1, n_pad)      # key-side orientation
    valid_k = valid.reshape(1, 1, n_pad)

    # Lane-dense output padding only when it is close to free.
    if c_s % 128 == 0 or c_s < 128:
        c_out, wo_p, bo_p = c_s, params["wo"], params["bo"]
    else:
        c_out = _round_up(c_s, 128)
        wo_p = jnp.zeros((hc, c_out), jnp.float32).at[:, :c_s].set(params["wo"])
        bo_p = jnp.zeros((1, c_out), jnp.float32).at[:, :c_s].set(params["bo"])

    kernel = functools.partial(_tmp_attention2_kernel, no_heads=no_heads)
    n_q = n_pad // tq

    grid_spec = pltpu.PrefetchScalarGridSpec(
        num_scalar_prefetch=0,
        grid=(B, n_q),
        in_specs=[
            pl.BlockSpec((1, no_heads, tq, c_hidden), lambda b, qi: (b, 0, qi, 0)),
            pl.BlockSpec((1, no_heads, c_hidden, n_pad), lambda b, qi: (b, 0, 0, 0)),
            pl.BlockSpec((1, no_heads, n_pad, c_hidden), lambda b, qi: (b, 0, 0, 0)),
            pl.BlockSpec((1, tq, 1), lambda b, qi: (b, qi, 0)),
            pl.BlockSpec((1, 1, n_pad), lambda b, qi: (b, 0, 0)),
            pl.BlockSpec((1, 1, n_pad), lambda b, qi: (0, 0, 0)),
            pl.BlockSpec((hc, c_out), lambda b, qi: (0, 0)),
            pl.BlockSpec((1, c_out), lambda b, qi: (0, 0)),
        ],
        out_specs=pl.BlockSpec((1, tq, c_out), lambda b, qi: (b, qi, 0)),
    )

    out = pl.pallas_call(
        kernel,
        out_shape=jax.ShapeDtypeStruct((B, n_pad, c_out), jnp.float32),
        grid_spec=grid_spec,
        compiler_params=pltpu.CompilerParams(
            # No scratch is carried across grid steps (K/V blocks are simply
            # revisited), so both axes are safely "parallel" for megacore.
            dimension_semantics=("parallel", "parallel"),
            vmem_limit_bytes=_pick_vmem_limit_bytes(),
        ),
    )(q4, k4, v4, mask_q, mask_k, valid_k, wo_p, bo_p)

    if n_pad != N or c_out != c_s:
        out = out[:, :N, :c_s]
    return out


def reference(s, mask, params, *, no_heads, c_hidden, inf=1e5):
    """Pure-JAX mirror of the PyTorch forward (full f32 matmul precision)."""
    with jax.default_matmul_precision("float32"):
        B, N, _ = s.shape
        hc = no_heads * c_hidden
        q = s @ params["wq"] + params["bq"]
        kv = (s @ params["wkv"] + params["bkv"]).reshape(B, N, no_heads,
                                                         2 * c_hidden)
        k = kv[..., :c_hidden]
        v = kv[..., c_hidden:]
        q = q.reshape(B, N, no_heads, c_hidden)
        scale = math.sqrt(1.0 / (3.0 * c_hidden))
        a = jnp.einsum("bnhc,bmhc->bhnm", q, k) * scale
        sq = mask[:, :, None] * mask[:, None, :]
        bias = inf * (sq - 1.0)
        logits = a + bias[:, None, :, :] + a     # a and a_g are the same tensor
        p = jax.nn.softmax(logits, axis=-1)
        o = jnp.einsum("bhnm,bmhc->bnhc", p, v).reshape(B, N, hc)
        return o @ params["wo"] + params["bo"]


if __name__ == "__main__":
    # Small shapes consistent with the module.
    B, N = 2, 8
    c_s, c_z = 32, 8
    c_hidden, no_heads = 16, 4
    hc = c_hidden * no_heads

    key = jax.random.PRNGKey(0)
    ks = jax.random.split(key, 10)

    s = jax.random.normal(ks[0], (B, N, c_s), dtype=jnp.float32)
    z = jax.random.normal(ks[1], (B, N, N, c_z), dtype=jnp.float32)  # unused
    mask = (jax.random.uniform(ks[2], (B, N)) > 0.2).astype(jnp.float32)

    def w(kk, shape, sc=0.1):
        return sc * jax.random.normal(kk, shape, dtype=jnp.float32)

    # linear_kv is a single [C_s, 2*hc] projection (matches PyTorch); the
    # per-head k/v split is done on the reshaped (H, 2*C) axis in both paths.
    params = {
        "wq": w(ks[3], (c_s, hc)), "bq": w(ks[4], (1, hc)),
        "wkv": w(ks[5], (c_s, 2 * hc)), "bkv": w(ks[6], (1, 2 * hc)),
        "wo": w(ks[7], (hc, c_s)), "bo": w(ks[8], (1, c_s)),
    }
    # TODO(synk): linear_g_q / linear_g_k / softplus exist in __init__ but are
    # dead code in the reference forward, so they are not materialized.

    out = tmp_attention2(s, z, mask, params, no_heads=no_heads,
                         c_hidden=c_hidden, inf=1e5)
    out = jax.block_until_ready(out)
    assert out.shape == (B, N, c_s), out.shape

    ref = reference(s, mask, params, no_heads=no_heads, c_hidden=c_hidden,
                    inf=1e5)

    # Tolerance is dominated by the deliberate bf16 MXU inputs (q/k/v and the
    # softmax probabilities) plus the approximate EUP reciprocal; the old
    # +/-1e5-bias association error is gone with multiplicative masking.
    # Keeping all matmuls in f32 tightens this to ~1e-3 at ~3x the MXU cost.
    max_err = float(jnp.max(jnp.abs(out - ref)))
    assert jnp.allclose(out, ref, rtol=1e-2, atol=1e-2), max_err
    print("KERNEL_OK")
</pallas_src>

<mosaic_0001>
module attributes {stable_mosaic.version = 11 : i64} {
  func.func @_tmp_attention2_kernel(%arg0: i32, %arg1: i32, %arg2: memref<1x4x8x16xbf16, #tpu.memory_space<vmem>>, %arg3: memref<1x4x16x8xbf16, #tpu.memory_space<vmem>>, %arg4: memref<1x4x8x16xbf16, #tpu.memory_space<vmem>>, %arg5: memref<1x8x1xf32, #tpu.memory_space<vmem>>, %arg6: memref<1x1x8xf32, #tpu.memory_space<vmem>>, %arg7: memref<1x1x8xf32, #tpu.memory_space<vmem>>, %arg8: memref<64x32xf32, #tpu.memory_space<vmem>>, %arg9: memref<1x32xf32, #tpu.memory_space<vmem>>, %arg10: memref<1x8x32xf32, #tpu.memory_space<vmem>>) attributes {dimension_semantics = [#tpu.dimension_semantics<parallel>, #tpu.dimension_semantics<parallel>], iteration_bounds = array<i64: 2, 1>, scalar_prefetch = 0 : i64, scratch_operands = 0 : i64, tpu.core_type = #tpu.core_type<tc>, window_params = [{transform_indices = @transform_0, window_bounds = array<i64: 1, 4, 8, 16>}, {transform_indices = @transform_1, window_bounds = array<i64: 1, 4, 16, 8>}, {transform_indices = @transform_2, window_bounds = array<i64: 1, 4, 8, 16>}, {transform_indices = @transform_3, window_bounds = array<i64: 1, 8, 1>}, {transform_indices = @transform_4, window_bounds = array<i64: 1, 1, 8>}, {pipeline_mode = #tpu.pipeline_mode<synchronous>, transform_indices = @transform_5, window_bounds = array<i64: 1, 1, 8>}, {pipeline_mode = #tpu.pipeline_mode<synchronous>, transform_indices = @transform_6, window_bounds = array<i64: 64, 32>}, {pipeline_mode = #tpu.pipeline_mode<synchronous>, transform_indices = @transform_7, window_bounds = array<i64: 1, 32>}, {transform_indices = @transform_8, window_bounds = array<i64: 1, 8, 32>}]} {
    %c0 = arith.constant 0 : index
    %c0_0 = arith.constant 0 : index
    %c0_1 = arith.constant 0 : index
    %0 = vector.load %arg5[%c0, %c0_0, %c0_1] : memref<1x8x1xf32, #tpu.memory_space<vmem>>, vector<1x8x1xf32>
    %1 = vector.shape_cast %0 : vector<1x8x1xf32> to vector<8x1xf32>
    %c0_2 = arith.constant 0 : index
    %c0_3 = arith.constant 0 : index
    %c0_4 = arith.constant 0 : index
    %2 = vector.load %arg6[%c0_2, %c0_3, %c0_4] : memref<1x1x8xf32, #tpu.memory_space<vmem>>, vector<1x1x8xf32>
    %3 = vector.shape_cast %2 : vector<1x1x8xf32> to vector<1x8xf32>
    %c0_5 = arith.constant 0 : index
    %c0_6 = arith.constant 0 : index
    %c0_7 = arith.constant 0 : index
    %4 = vector.load %arg7[%c0_5, %c0_6, %c0_7] : memref<1x1x8xf32, #tpu.memory_space<vmem>>, vector<1x1x8xf32>
    %5 = vector.shape_cast %4 : vector<1x1x8xf32> to vector<1x8xf32>
    %6 = vector.broadcast %1 : vector<8x1xf32> to vector<8x8xf32>
    %7 = vector.broadcast %3 : vector<1x8xf32> to vector<8x8xf32>
    %8 = arith.mulf %6, %7 : vector<8x8xf32>
    %cst = arith.constant 1.000000e+00 : f32
    %9 = vector.broadcast %cst : f32 to vector<8x1xf32>
    %10 = arith.subf %9, %1 : vector<8x1xf32>
    %11 = vector.broadcast %10 : vector<8x1xf32> to vector<8x8xf32>
    %12 = vector.broadcast %5 : vector<1x8xf32> to vector<8x8xf32>
    %13 = arith.mulf %11, %12 : vector<8x8xf32>
    %14 = arith.addf %8, %13 : vector<8x8xf32>
    %c0_8 = arith.constant 0 : index
    %c0_9 = arith.constant 0 : index
    %c0_10 = arith.constant 0 : index
    %c0_11 = arith.constant 0 : index
    %15 = vector.load %arg2[%c0_8, %c0_9, %c0_10, %c0_11] : memref<1x4x8x16xbf16, #tpu.memory_space<vmem>>, vector<1x1x8x16xbf16>
    %16 = vector.shape_cast %15 : vector<1x1x8x16xbf16> to vector<8x16xbf16>
    %c0_12 = arith.constant 0 : index
    %c0_13 = arith.constant 0 : index
    %c0_14 = arith.constant 0 : index
    %c0_15 = arith.constant 0 : index
    %17 = vector.load %arg3[%c0_12, %c0_13, %c0_14, %c0_15] : memref<1x4x16x8xbf16, #tpu.memory_space<vmem>>, vector<1x1x16x8xbf16>
    %18 = vector.shape_cast %17 : vector<1x1x16x8xbf16> to vector<16x8xbf16>
    %c0_16 = arith.constant 0 : index
    %c0_17 = arith.constant 0 : index
    %c0_18 = arith.constant 0 : index
    %c0_19 = arith.constant 0 : index
    %19 = vector.load %arg4[%c0_16, %c0_17, %c0_18, %c0_19] : memref<1x4x8x16xbf16, #tpu.memory_space<vmem>>, vector<1x1x8x16xbf16>
    %20 = vector.shape_cast %19 : vector<1x1x8x16xbf16> to vector<8x16xbf16>
    %cst_20 = arith.constant dense<0.000000e+00> : vector<8x8xf32>
    %21 = tpu.matmul %16, %18, %cst_20 {dimension_numbers = #tpu.dot_dimension_numbers<[1], [0], [0], [1], [0, 0, 1, 1], [], []>} : vector<8x16xbf16>, vector<16x8xbf16>, vector<8x8xf32> -> vector<8x8xf32>
    %cst_21 = arith.constant dense<0xFF800000> : vector<8xf32>
    %22 = vector.multi_reduction <maximumf>, %21, %cst_21 [1] : vector<8x8xf32> to vector<8xf32>
    %23 = vector.shape_cast %22 : vector<8xf32> to vector<8x1xf32>
    %24 = vector.broadcast %23 : vector<8x1xf32> to vector<8x8xf32>
    %25 = arith.subf %21, %24 : vector<8x8xf32>
    %26 = math.exp %25 : vector<8x8xf32>
    %27 = arith.mulf %26, %14 : vector<8x8xf32>
    %cst_22 = arith.constant dense<0.000000e+00> : vector<8xf32>
    %28 = vector.multi_reduction <add>, %27, %cst_22 [1] : vector<8x8xf32> to vector<8xf32>
    %29 = vector.shape_cast %28 : vector<8xf32> to vector<8x1xf32>
    %30 = arith.truncf %27 : vector<8x8xf32> to vector<8x8xbf16>
    %cst_23 = arith.constant dense<0.000000e+00> : vector<8x16xf32>
    %31 = tpu.matmul %30, %20, %cst_23 {dimension_numbers = #tpu.dot_dimension_numbers<[1], [0], [0], [1], [0, 0, 1, 1], [], []>} : vector<8x8xbf16>, vector<8x16xbf16>, vector<8x16xf32> -> vector<8x16xf32>
    %cst_24 = arith.constant 1.000000e-30 : f32
    %32 = vector.broadcast %cst_24 : f32 to vector<8x1xf32>
    %33 = arith.maximumf %29, %32 : vector<8x1xf32>
    %34 = tpu.reciprocal %33 {approx = true} : vector<8x1xf32> -> vector<8x1xf32>
    %35 = vector.broadcast %34 : vector<8x1xf32> to vector<8x16xf32>
    %36 = arith.mulf %31, %35 : vector<8x16xf32>
    %c0_25 = arith.constant 0 : index
    %c1 = arith.constant 1 : index
    %c0_26 = arith.constant 0 : index
    %c0_27 = arith.constant 0 : index
    %37 = vector.load %arg2[%c0_25, %c1, %c0_26, %c0_27] : memref<1x4x8x16xbf16, #tpu.memory_space<vmem>>, vector<1x1x8x16xbf16>
    %38 = vector.shape_cast %37 : vector<1x1x8x16xbf16> to vector<8x16xbf16>
    %c0_28 = arith.constant 0 : index
    %c1_29 = arith.constant 1 : index
    %c0_30 = arith.constant 0 : index
    %c0_31 = arith.constant 0 : index
    %39 = vector.load %arg3[%c0_28, %c1_29, %c0_30, %c0_31] : memref<1x4x16x8xbf16, #tpu.memory_space<vmem>>, vector<1x1x16x8xbf16>
    %40 = vector.shape_cast %39 : vector<1x1x16x8xbf16> to vector<16x8xbf16>
    %c0_32 = arith.constant 0 : index
    %c1_33 = arith.constant 1 : index
    %c0_34 = arith.constant 0 : index
    %c0_35 = arith.constant 0 : index
    %41 = vector.load %arg4[%c0_32, %c1_33, %c0_34, %c0_35] : memref<1x4x8x16xbf16, #tpu.memory_space<vmem>>, vector<1x1x8x16xbf16>
    %42 = vector.shape_cast %41 : vector<1x1x8x16xbf16> to vector<8x16xbf16>
    %cst_36 = arith.constant dense<0.000000e+00> : vector<8x8xf32>
    %43 = tpu.matmul %38, %40, %cst_36 {dimension_numbers = #tpu.dot_dimension_numbers<[1], [0], [0], [1], [0, 0, 1, 1], [], []>} : vector<8x16xbf16>, vector<16x8xbf16>, vector<8x8xf32> -> vector<8x8xf32>
    %cst_37 = arith.constant dense<0xFF800000> : vector<8xf32>
    %44 = vector.multi_reduction <maximumf>, %43, %cst_37 [1] : vector<8x8xf32> to vector<8xf32>
    %45 = vector.shape_cast %44 : vector<8xf32> to vector<8x1xf32>
    %46 = vector.broadcast %45 : vector<8x1xf32> to vector<8x8xf32>
    %47 = arith.subf %43, %46 : vector<8x8xf32>
    %48 = math.exp %47 : vector<8x8xf32>
    %49 = arith.mulf %48, %14 : vector<8x8xf32>
    %cst_38 = arith.constant dense<0.000000e+00> : vector<8xf32>
    %50 = vector.multi_reduction <add>, %49, %cst_38 [1] : vector<8x8xf32> to vector<8xf32>
    %51 = vector.shape_cast %50 : vector<8xf32> to vector<8x1xf32>
    %52 = arith.truncf %49 : vector<8x8xf32> to vector<8x8xbf16>
    %cst_39 = arith.constant dense<0.000000e+00> : vector<8x16xf32>
    %53 = tpu.matmul %52, %42, %cst_39 {dimension_numbers = #tpu.dot_dimension_numbers<[1], [0], [0], [1], [0, 0, 1, 1], [], []>} : vector<8x8xbf16>, vector<8x16xbf16>, vector<8x16xf32> -> vector<8x16xf32>
    %cst_40 = arith.constant 1.000000e-30 : f32
    %54 = vector.broadcast %cst_40 : f32 to vector<8x1xf32>
    %55 = arith.maximumf %51, %54 : vector<8x1xf32>
    %56 = tpu.reciprocal %55 {approx = true} : vector<8x1xf32> -> vector<8x1xf32>
    %57 = vector.broadcast %56 : vector<8x1xf32> to vector<8x16xf32>
    %58 = arith.mulf %53, %57 : vector<8x16xf32>
    %c0_41 = arith.constant 0 : index
    %c2 = arith.constant 2 : index
    %c0_42 = arith.constant 0 : index
    %c0_43 = arith.constant 0 : index
    %59 = vector.load %arg2[%c0_41, %c2, %c0_42, %c0_43] : memref<1x4x8x16xbf16, #tpu.memory_space<vmem>>, vector<1x1x8x16xbf16>
    %60 = vector.shape_cast %59 : vector<1x1x8x16xbf16> to vector<8x16xbf16>
    %c0_44 = arith.constant 0 : index
    %c2_45 = arith.constant 2 : index
    %c0_46 = arith.constant 0 : index
    %c0_47 = arith.constant 0 : index
    %61 = vector.load %arg3[%c0_44, %c2_45, %c0_46, %c0_47] : memref<1x4x16x8xbf16, #tpu.memory_space<vmem>>, vector<1x1x16x8xbf16>
    %62 = vector.shape_cast %61 : vector<1x1x16x8xbf16> to vector<16x8xbf16>
    %c0_48 = arith.constant 0 : index
    %c2_49 = arith.constant 2 : index
    %c0_50 = arith.constant 0 : index
    %c0_51 = arith.constant 0 : index
    %63 = vector.load %arg4[%c0_48, %c2_49, %c0_50, %c0_51] : memref<1x4x8x16xbf16, #tpu.memory_space<vmem>>, vector<1x1x8x16xbf16>
    %64 = vector.shape_cast %63 : vector<1x1x8x16xbf16> to vector<8x16xbf16>
    %cst_52 = arith.constant dense<0.000000e+00> : vector<8x8xf32>
    %65 = tpu.matmul %60, %62, %cst_52 {dimension_numbers = #tpu.dot_dimension_numbers<[1], [0], [0], [1], [0, 0, 1, 1], [], []>} : vector<8x16xbf16>, vector<16x8xbf16>, vector<8x8xf32> -> vector<8x8xf32>
    %cst_53 = arith.constant dense<0xFF800000> : vector<8xf32>
    %66 = vector.multi_reduction <maximumf>, %65, %cst_53 [1] : vector<8x8xf32> to vector<8xf32>
    %67 = vector.shape_cast %66 : vector<8xf32> to vector<8x1xf32>
    %68 = vector.broadcast %67 : vector<8x1xf32> to vector<8x8xf32>
    %69 = arith.subf %65, %68 : vector<8x8xf32>
    %70 = math.exp %69 : vector<8x8xf32>
    %71 = arith.mulf %70, %14 : vector<8x8xf32>
    %cst_54 = arith.constant dense<0.000000e+00> : vector<8xf32>
    %72 = vector.multi_reduction <add>, %71, %cst_54 [1] : vector<8x8xf32> to vector<8xf32>
    %73 = vector.shape_cast %72 : vector<8xf32> to vector<8x1xf32>
    %74 = arith.truncf %71 : vector<8x8xf32> to vector<8x8xbf16>
    %cst_55 = arith.constant dense<0.000000e+00> : vector<8x16xf32>
    %75 = tpu.matmul %74, %64, %cst_55 {dimension_numbers = #tpu.dot_dimension_numbers<[1], [0], [0], [1], [0, 0, 1, 1], [], []>} : vector<8x8xbf16>, vector<8x16xbf16>, vector<8x16xf32> -> vector<8x16xf32>
    %cst_56 = arith.constant 1.000000e-30 : f32
    %76 = vector.broadcast %cst_56 : f32 to vector<8x1xf32>
    %77 = arith.maximumf %73, %76 : vector<8x1xf32>
    %78 = tpu.reciprocal %77 {approx = true} : vector<8x1xf32> -> vector<8x1xf32>
    %79 = vector.broadcast %78 : vector<8x1xf32> to vector<8x16xf32>
    %80 = arith.mulf %75, %79 : vector<8x16xf32>
    %c0_57 = arith.constant 0 : index
    %c3 = arith.constant 3 : index
    %c0_58 = arith.constant 0 : index
    %c0_59 = arith.constant 0 : index
    %81 = vector.load %arg2[%c0_57, %c3, %c0_58, %c0_59] : memref<1x4x8x16xbf16, #tpu.memory_space<vmem>>, vector<1x1x8x16xbf16>
    %82 = vector.shape_cast %81 : vector<1x1x8x16xbf16> to vector<8x16xbf16>
    %c0_60 = arith.constant 0 : index
    %c3_61 = arith.constant 3 : index
    %c0_62 = arith.constant 0 : index
    %c0_63 = arith.constant 0 : index
    %83 = vector.load %arg3[%c0_60, %c3_61, %c0_62, %c0_63] : memref<1x4x16x8xbf16, #tpu.memory_space<vmem>>, vector<1x1x16x8xbf16>
    %84 = vector.shape_cast %83 : vector<1x1x16x8xbf16> to vector<16x8xbf16>
    %c0_64 = arith.constant 0 : index
    %c3_65 = arith.constant 3 : index
    %c0_66 = arith.constant 0 : index
    %c0_67 = arith.constant 0 : index
    %85 = vector.load %arg4[%c0_64, %c3_65, %c0_66, %c0_67] : memref<1x4x8x16xbf16, #tpu.memory_space<vmem>>, vector<1x1x8x16xbf16>
    %86 = vector.shape_cast %85 : vector<1x1x8x16xbf16> to vector<8x16xbf16>
    %cst_68 = arith.constant dense<0.000000e+00> : vector<8x8xf32>
    %87 = tpu.matmul %82, %84, %cst_68 {dimension_numbers = #tpu.dot_dimension_numbers<[1], [0], [0], [1], [0, 0, 1, 1], [], []>} : vector<8x16xbf16>, vector<16x8xbf16>, vector<8x8xf32> -> vector<8x8xf32>
    %cst_69 = arith.constant dense<0xFF800000> : vector<8xf32>
    %88 = vector.multi_reduction <maximumf>, %87, %cst_69 [1] : vector<8x8xf32> to vector<8xf32>
    %89 = vector.shape_cast %88 : vector<8xf32> to vector<8x1xf32>
    %90 = vector.broadcast %89 : vector<8x1xf32> to vector<8x8xf32>
    %91 = arith.subf %87, %90 : vector<8x8xf32>
    %92 = math.exp %91 : vector<8x8xf32>
    %93 = arith.mulf %92, %14 : vector<8x8xf32>
    %cst_70 = arith.constant dense<0.000000e+00> : vector<8xf32>
    %94 = vector.multi_reduction <add>, %93, %cst_70 [1] : vector<8x8xf32> to vector<8xf32>
    %95 = vector.shape_cast %94 : vector<8xf32> to vector<8x1xf32>
    %96 = arith.truncf %93 : vector<8x8xf32> to vector<8x8xbf16>
    %cst_71 = arith.constant dense<0.000000e+00> : vector<8x16xf32>
    %97 = tpu.matmul %96, %86, %cst_71 {dimension_numbers = #tpu.dot_dimension_numbers<[1], [0], [0], [1], [0, 0, 1, 1], [], []>} : vector<8x8xbf16>, vector<8x16xbf16>, vector<8x16xf32> -> vector<8x16xf32>
    %cst_72 = arith.constant 1.000000e-30 : f32
    %98 = vector.broadcast %cst_72 : f32 to vector<8x1xf32>
    %99 = arith.maximumf %95, %98 : vector<8x1xf32>
    %100 = tpu.reciprocal %99 {approx = true} : vector<8x1xf32> -> vector<8x1xf32>
    %101 = vector.broadcast %100 : vector<8x1xf32> to vector<8x16xf32>
    %102 = arith.mulf %97, %101 : vector<8x16xf32>
    %103 = tpu.concatenate %36, %58, %80, %102 in 1 : vector<8x16xf32>, vector<8x16xf32>, vector<8x16xf32>, vector<8x16xf32> -> vector<8x64xf32>
    %c0_73 = arith.constant 0 : index
    %c0_74 = arith.constant 0 : index
    %104 = vector.load %arg8[%c0_73, %c0_74] : memref<64x32xf32, #tpu.memory_space<vmem>>, vector<64x32xf32>
    %cst_75 = arith.constant dense<0.000000e+00> : vector<8x32xf32>
    %105 = tpu.matmul %103, %104, %cst_75 {dimension_numbers = #tpu.dot_dimension_numbers<[1], [0], [0], [1], [0, 0, 1, 1], [], []>} : vector<8x64xf32>, vector<64x32xf32>, vector<8x32xf32> -> vector<8x32xf32>
    %c0_76 = arith.constant 0 : index
    %c0_77 = arith.constant 0 : index
    %106 = vector.load %arg9[%c0_76, %c0_77] : memref<1x32xf32, #tpu.memory_space<vmem>>, vector<1x32xf32>
    %107 = vector.broadcast %106 : vector<1x32xf32> to vector<8x32xf32>
    %108 = arith.addf %105, %107 : vector<8x32xf32>
    %c0_78 = arith.constant 0 : index
    %c0_79 = arith.constant 0 : index
    %c0_80 = arith.constant 0 : index
    %109 = vector.load %arg10[%c0_78, %c0_79, %c0_80] : memref<1x8x32xf32, #tpu.memory_space<vmem>>, vector<1x8x32xf32>
    %110 = vector.shape_cast %109 : vector<1x8x32xf32> to vector<8x32xf32>
    %111 = vector.shape_cast %108 : vector<8x32xf32> to vector<1x8x32xf32>
    tpu.vector_store %arg10[%c0_78, %c0_79, %c0_80], %111 {strides = array<i32>} : memref<1x8x32xf32, #tpu.memory_space<vmem>>, vector<1x8x32xf32>,
    return
  }
  func.func @transform_0(%arg0: i32, %arg1: i32) -> (i32, i32, i32, i32) {
    %c0_i32 = arith.constant 0 : i32
    %c0_i32_0 = arith.constant 0 : i32
    %c0_i32_1 = arith.constant 0 : i32
    return %arg0, %c0_i32, %arg1, %c0_i32_0 : i32, i32, i32, i32
  }
  func.func @transform_1(%arg0: i32, %arg1: i32) -> (i32, i32, i32, i32) {
    %c0_i32 = arith.constant 0 : i32
    %c0_i32_0 = arith.constant 0 : i32
    %c0_i32_1 = arith.constant 0 : i32
    %c0_i32_2 = arith.constant 0 : i32
    return %arg0, %c0_i32, %c0_i32_0, %c0_i32_1 : i32, i32, i32, i32
  }
  func.func @transform_2(%arg0: i32, %arg1: i32) -> (i32, i32, i32, i32) {
    %c0_i32 = arith.constant 0 : i32
    %c0_i32_0 = arith.constant 0 : i32
    %c0_i32_1 = arith.constant 0 : i32
    %c0_i32_2 = arith.constant 0 : i32
    return %arg0, %c0_i32, %c0_i32_0, %c0_i32_1 : i32, i32, i32, i32
  }
  func.func @transform_3(%arg0: i32, %arg1: i32) -> (i32, i32, i32) {
    %c0_i32 = arith.constant 0 : i32
    %c0_i32_0 = arith.constant 0 : i32
    return %arg0, %arg1, %c0_i32 : i32, i32, i32
  }
  func.func @transform_4(%arg0: i32, %arg1: i32) -> (i32, i32, i32) {
    %c0_i32 = arith.constant 0 : i32
    %c0_i32_0 = arith.constant 0 : i32
    %c0_i32_1 = arith.constant 0 : i32
    return %arg0, %c0_i32, %c0_i32_0 : i32, i32, i32
  }
  func.func @transform_5(%arg0: i32, %arg1: i32) -> (i32, i32, i32) {
    %c0_i32 = arith.constant 0 : i32
    %c0_i32_0 = arith.constant 0 : i32
    %c0_i32_1 = arith.constant 0 : i32
    %c0_i32_2 = arith.constant 0 : i32
    return %c0_i32, %c0_i32_0, %c0_i32_1 : i32, i32, i32
  }
  func.func @transform_6(%arg0: i32, %arg1: i32) -> (i32, i32) {
    %c0_i32 = arith.constant 0 : i32
    %c0_i32_0 = arith.constant 0 : i32
    %c0_i32_1 = arith.constant 0 : i32
    return %c0_i32, %c0_i32_0 : i32, i32
  }
  func.func @transform_7(%arg0: i32, %arg1: i32) -> (i32, i32) {
    %c0_i32 = arith.constant 0 : i32
    %c0_i32_0 = arith.constant 0 : i32
    %c0_i32_1 = arith.constant 0 : i32
    return %c0_i32, %c0_i32_0 : i32, i32
  }
  func.func @transform_8(%arg0: i32, %arg1: i32) -> (i32, i32, i32) {
    %c0_i32 = arith.constant 0 : i32
    %c0_i32_0 = arith.constant 0 : i32
    return %arg0, %arg1, %c0_i32 : i32, i32, i32
  }
}

</mosaic_0001>

<llo_original>
// kernel: tpu_custom_call.1
$region0: #{tpu_custom_call.1}
  #allocation0 [shape = 'u32[]', space=smem, size = 0x4, offset = 0x4, fixed_abs, tag = 'smem constant byte address 0x4 - core index']
  #allocation1 [shape = 'u32[72,128]{1,0:T(1,128)}', space=vmem, size = 0x9000, scoped, tag = 'internal scratch']
  %s0 = inlined_call_operand.vmem [shape: bf16[2,4,8,16], index: 0, kind: input, shape index: {}]
  %s1 = inlined_call_operand.vmem [shape: bf16[2,4,16,8], index: 1, kind: input, shape index: {}]
  %s2 = inlined_call_operand.vmem [shape: bf16[2,4,8,16], index: 2, kind: input, shape index: {}]
  %s3 = inlined_call_operand.vmem [shape: f32[2,8,1], index: 3, kind: input, shape index: {}]
  %s4 = inlined_call_operand.vmem [shape: f32[2,1,8], index: 4, kind: input, shape index: {}]
  %s5 = inlined_call_operand.vmem [shape: f32[1,1,8], index: 5, kind: input, shape index: {}]
  %s6 = inlined_call_operand.vmem [shape: f32[64,32], index: 6, kind: input, shape index: {}]
  %s7 = inlined_call_operand.vmem [shape: f32[1,32], index: 7, kind: input, shape index: {}]
  %s8 = inlined_call_operand.hbm [shape: f32[2,8,32], index: 8, kind: output, shape index: {}]
  %s9 = sld [smem:[#allocation0]]
  $region65: #{tpu_custom_call.1} parent=0
    _
  %s11 = ssub.s32 1, %s9
  %s12 = scalar_select 0, %s11, %s9
  $region1: #{tpu_custom_call.1} parent=0
    #allocation2 [shape = 'u8[8192]{0}', space=vmem, size = 0x2000, scoped, tag = 'output window, operand 0']
    #allocation3 [shape = 's32[2]{0}', space=sflag, size = 0x8, scoped, tag = 'scoped memory for tpu_custom_call.1']
    %13 = vsyncpa [#allocation3], 0
    %s14 = scalar_lea.sflag [#allocation3], 1
    %15 = vsyncpa %s14, 0
    loop: start=0, step=1, limit=4
    $region2: #{tpu_custom_call.1} parent=1 // loop_pre_header
      _
    $region3: #{tpu_custom_call.1} parent=1 // loop_header
      %s17 = sphi 0, %s21
      %p18 = scmp.ge.s32.totalorder %s17, 4
      %s24 = sphi 0, %s36
      %s25 = sphi 0, %s32
      %s26 = sphi 0, %s24
      %s27 = sphi 0, %s25
      %s28 = sphi 0, %s26
      %s29 = sphi 0, %s27
      %s41 = sphi 0, %s43
      %s44 = sphi 0, %s41
      %s45 = sphi 0, %s44
      %s61 = sphi 0, %s45
      %s67 = sphi 0, %s69
      %s70 = sphi 0, %s67
      %s71 = sphi 0, %s70
      %s87 = sphi 0, %s71
      %s93 = sphi 0, %s95
      %s96 = sphi 0, %s93
      %s97 = sphi 0, %s96
      %s113 = sphi 0, %s97
      %s121 = sphi 0, %s123
      %s124 = sphi 0, %s121
      %s125 = sphi 0, %s124
      %s141 = sphi 0, %s125
      %s147 = sphi 0, %s149
      %s150 = sphi 0, %s147
      %s151 = sphi 0, %s150
      %s167 = sphi 0, %s151
      %s171 = sphi 0, %s171
      %s173 = sphi 0, %s171
      %s174 = sphi 0, %s173
      %s188 = sphi 0, %s174
      %s192 = sphi 0, %s192
      %s194 = sphi 0, %s192
      %s195 = sphi 0, %s194
      %s209 = sphi 0, %s195
      %s213 = sphi 0, %s213
      %s215 = sphi 0, %s213
      %s216 = sphi 0, %s215
      %s230 = sphi 0, %s216
      %s238 = sphi 0, %s240
      %s241 = sphi 0, %s238
      %s242 = sphi 0, %s241
      %s258 = sphi 0, %s242
    $region4: #{tpu_custom_call.1} parent=1 // loop_header_branch
      %20 = sbr.rel (%p18) target = $region8
    $region5: #{tpu_custom_call.1} parent=1 // loop_body
      %s22 = ssub.s32 %s17, 1
      %s23 = ssub.s32 %s17, 2
      %s30 = sadd.s32 1, %s25
      %p31 = scmp.ge.s32.totalorder %s30, 1
      %s32 = scalar_select %p31, 0, %s30
      %s33 = sadd.s32 1, %s24
      %s34 = scalar_select %p31, %s33, %s24
      %p35 = scmp.ge.s32.totalorder %s34, 2
      %s36 = scalar_select %p35, 0, %s34
      %s37 = ssub.s32 %s24, %s36
      %s38 = ssub.s32 %s25, %s32
      %s39 = sor.u32 %s37, %s38
      %p40 = scmp.eq.s32.totalorder %s39, 0
      %s42 = sadd.s32 %s41, 1
      %s43 = scalar_select %p40, %s41, %s42
      %p46 = pneg %p40
      %p47 = scmp.eq.s32.totalorder %s17, 1
      %p48 = por %p46, %p47
      %p49 = scmp.ne.s32.totalorder %s41, %s44
      %p50 = scmp.eq.s32.totalorder %s17, 0
      %p51 = por %p49, %p50
      %p52 = scmp.ne.s32.totalorder %s41, %s44
      %p53 = scmp.eq.s32.totalorder %s22, 1
      %p54 = por %p52, %p53
      %p55 = scmp.ne.s32.totalorder %s44, %s45
      %p56 = scmp.eq.s32.totalorder %s22, 0
      %p57 = por %p55, %p56
      %p58 = scmp.ne.s32.totalorder %s44, %s45
      %p59 = scmp.eq.s32.totalorder %s23, 1
      %p60 = por %p58, %p59
      %p62 = scmp.ne.s32.totalorder %s45, %s61
      %p63 = scmp.eq.s32.totalorder %s23, 0
      %p64 = por %p62, %p63
      %s65 = ssub.s32 %s24, %s36
      %p66 = scmp.eq.s32.totalorder %s65, 0
      %s68 = sadd.s32 %s67, 1
      %s69 = scalar_select %p66, %s67, %s68
      %p72 = pneg %p66
      %p73 = scmp.eq.s32.totalorder %s17, 1
      %p74 = por %p72, %p73
      %p75 = scmp.ne.s32.totalorder %s67, %s70
      %p76 = scmp.eq.s32.totalorder %s17, 0
      %p77 = por %p75, %p76
      %p78 = scmp.ne.s32.totalorder %s67, %s70
      %p79 = scmp.eq.s32.totalorder %s22, 1
      %p80 = por %p78, %p79
      %p81 = scmp.ne.s32.totalorder %s70, %s71
      %p82 = scmp.eq.s32.totalorder %s22, 0
      %p83 = por %p81, %p82
      %p84 = scmp.ne.s32.totalorder %s70, %s71
      %p85 = scmp.eq.s32.totalorder %s23, 1
      %p86 = por %p84, %p85
      %p88 = scmp.ne.s32.totalorder %s71, %s87
      %p89 = scmp.eq.s32.totalorder %s23, 0
      %p90 = por %p88, %p89
      %s91 = ssub.s32 %s24, %s36
      %p92 = scmp.eq.s32.totalorder %s91, 0
      %s94 = sadd.s32 %s93, 1
      %s95 = scalar_select %p92, %s93, %s94
      %p98 = pneg %p92
      %p99 = scmp.eq.s32.totalorder %s17, 1
      %p100 = por %p98, %p99
      %p101 = scmp.ne.s32.totalorder %s93, %s96
      %p102 = scmp.eq.s32.totalorder %s17, 0
      %p103 = por %p101, %p102
      %p104 = scmp.ne.s32.totalorder %s93, %s96
      %p105 = scmp.eq.s32.totalorder %s22, 1
      %p106 = por %p104, %p105
      %p107 = scmp.ne.s32.totalorder %s96, %s97
      %p108 = scmp.eq.s32.totalorder %s22, 0
      %p109 = por %p107, %p108
      %p110 = scmp.ne.s32.totalorder %s96, %s97
      %p111 = scmp.eq.s32.totalorder %s23, 1
      %p112 = por %p110, %p111
      %p114 = scmp.ne.s32.totalorder %s97, %s113
      %p115 = scmp.eq.s32.totalorder %s23, 0
      %p116 = por %p114, %p115
      %s117 = ssub.s32 %s24, %s36
      %s118 = ssub.s32 %s25, %s32
      %s119 = sor.u32 %s117, %s118
      %p120 = scmp.eq.s32.totalorder %s119, 0
      %s122 = sadd.s32 %s121, 1
      %s123 = scalar_select %p120, %s121, %s122
      %p126 = pneg %p120
      %p127 = scmp.eq.s32.totalorder %s17, 1
      %p128 = por %p126, %p127
      %p129 = scmp.ne.s32.totalorder %s121, %s124
      %p130 = scmp.eq.s32.totalorder %s17, 0
      %p131 = por %p129, %p130
      %p132 = scmp.ne.s32.totalorder %s121, %s124
      %p133 = scmp.eq.s32.totalorder %s22, 1
      %p134 = por %p132, %p133
      %p135 = scmp.ne.s32.totalorder %s124, %s125
      %p136 = scmp.eq.s32.totalorder %s22, 0
      %p137 = por %p135, %p136
      %p138 = scmp.ne.s32.totalorder %s124, %s125
      %p139 = scmp.eq.s32.totalorder %s23, 1
      %p140 = por %p138, %p139
      %p142 = scmp.ne.s32.totalorder %s125, %s141
      %p143 = scmp.eq.s32.totalorder %s23, 0
      %p144 = por %p142, %p143
      %s145 = ssub.s32 %s24, %s36
      %p146 = scmp.eq.s32.totalorder %s145, 0
      %s148 = sadd.s32 %s147, 1
      %s149 = scalar_select %p146, %s147, %s148
      %p152 = pneg %p146
      %p153 = scmp.eq.s32.totalorder %s17, 1
      %p154 = por %p152, %p153
      %p155 = scmp.ne.s32.totalorder %s147, %s150
      %p156 = scmp.eq.s32.totalorder %s17, 0
      %p157 = por %p155, %p156
      %p158 = scmp.ne.s32.totalorder %s147, %s150
      %p159 = scmp.eq.s32.totalorder %s22, 1
      %p160 = por %p158, %p159
      %p161 = scmp.ne.s32.totalorder %s150, %s151
      %p162 = scmp.eq.s32.totalorder %s22, 0
      %p163 = por %p161, %p162
      %p164 = scmp.ne.s32.totalorder %s150, %s151
      %p165 = scmp.eq.s32.totalorder %s23, 1
      %p166 = por %p164, %p165
      %p168 = scmp.ne.s32.totalorder %s151, %s167
      %p169 = scmp.eq.s32.totalorder %s23, 0
      %p170 = por %p168, %p169
      %s172 = sadd.s32 %s171, 1
      %p175 = scmp.eq.s32.totalorder %s17, 1
      %p176 = scmp.ne.s32.totalorder %s171, %s173
      %p177 = scmp.eq.s32.totalorder %s17, 0
      %p178 = por %p176, %p177
      %p179 = scmp.ne.s32.totalorder %s171, %s173
      %p180 = scmp.eq.s32.totalorder %s22, 1
      %p181 = por %p179, %p180
      %p182 = scmp.ne.s32.totalorder %s173, %s174
      %p183 = scmp.eq.s32.totalorder %s22, 0
      %p184 = por %p182, %p183
      %p185 = scmp.ne.s32.totalorder %s173, %s174
      %p186 = scmp.eq.s32.totalorder %s23, 1
      %p187 = por %p185, %p186
      %p189 = scmp.ne.s32.totalorder %s174, %s188
      %p190 = scmp.eq.s32.totalorder %s23, 0
      %p191 = por %p189, %p190
      %s193 = sadd.s32 %s192, 1
      %p196 = scmp.eq.s32.totalorder %s17, 1
      %p197 = scmp.ne.s32.totalorder %s192, %s194
      %p198 = scmp.eq.s32.totalorder %s17, 0
      %p199 = por %p197, %p198
      %p200 = scmp.ne.s32.totalorder %s192, %s194
      %p201 = scmp.eq.s32.totalorder %s22, 1
      %p202 = por %p200, %p201
      %p203 = scmp.ne.s32.totalorder %s194, %s195
      %p204 = scmp.eq.s32.totalorder %s22, 0
      %p205 = por %p203, %p204
      %p206 = scmp.ne.s32.totalorder %s194, %s195
      %p207 = scmp.eq.s32.totalorder %s23, 1
      %p208 = por %p206, %p207
      %p210 = scmp.ne.s32.totalorder %s195, %s209
      %p211 = scmp.eq.s32.totalorder %s23, 0
      %p212 = por %p210, %p211
      %s214 = sadd.s32 %s213, 1
      %p217 = scmp.eq.s32.totalorder %s17, 1
      %p218 = scmp.ne.s32.totalorder %s213, %s215
      %p219 = scmp.eq.s32.totalorder %s17, 0
      %p220 = por %p218, %p219
      %p221 = scmp.ne.s32.totalorder %s213, %s215
      %p222 = scmp.eq.s32.totalorder %s22, 1
      %p223 = por %p221, %p222
      %p224 = scmp.ne.s32.totalorder %s215, %s216
      %p225 = scmp.eq.s32.totalorder %s22, 0
      %p226 = por %p224, %p225
      %p227 = scmp.ne.s32.totalorder %s215, %s216
      %p228 = scmp.eq.s32.totalorder %s23, 1
      %p229 = por %p227, %p228
      %p231 = scmp.ne.s32.totalorder %s216, %s230
      %p232 = scmp.eq.s32.totalorder %s23, 0
      %p233 = por %p231, %p232
      %s234 = ssub.s32 %s24, %s36
      %s235 = ssub.s32 %s25, %s32
      %s236 = sor.u32 %s234, %s235
      %p237 = scmp.eq.s32.totalorder %s236, 0
      %s239 = sadd.s32 %s238, 1
      %s240 = scalar_select %p237, %s238, %s239
      %p243 = pneg %p237
      %p244 = scmp.eq.s32.totalorder %s17, 1
      %p245 = por %p243, %p244
      %p246 = scmp.ne.s32.totalorder %s238, %s241
      %p247 = scmp.eq.s32.totalorder %s17, 0
      %p248 = por %p246, %p247
      %p249 = scmp.ne.s32.totalorder %s238, %s241
      %p250 = scmp.eq.s32.totalorder %s22, 1
      %p251 = por %p249, %p250
      %p252 = scmp.ne.s32.totalorder %s241, %s242
      %p253 = scmp.eq.s32.totalorder %s22, 0
      %p254 = por %p252, %p253
      %p255 = scmp.ne.s32.totalorder %s241, %s242
      %p256 = scmp.eq.s32.totalorder %s23, 1
      %p257 = por %p255, %p256
      %p259 = scmp.ne.s32.totalorder %s242, %s258
      %p260 = scmp.eq.s32.totalorder %s23, 0
      %p261 = por %p259, %p260
      %p262 = scmp.le.s32.totalorder 1, %s17
      %p263 = scmp.lt.s32.totalorder %s17, 3
      %p264 = pnand %p262, %p263
      %p265 = pneg %p264
      // Predicated region
      $region9: #{tpu_custom_call.1} parent=5 // pred_check
        _
      $region10: #{tpu_custom_call.1} parent=5 // pred_check_branch
        %267 = sbr.rel (%p264) target = $region12
      $region11: #{tpu_custom_call.1} parent=5 // pred_region
        %s268 = ssub.s32 %s17, 1
        // Predicated region
        $region13: #{tpu_custom_call.1} parent=11 // pred_check
          %p269 = pneg %p184
        $region14: #{tpu_custom_call.1} parent=11 // pred_check_branch
          %271 = sbr.rel (%p269) target = $region16
        $region15: #{tpu_custom_call.1} parent=11 // pred_region
          _
        $region16: #{tpu_custom_call.1} parent=11 // pred_fallthru
          _
        // Predicated region
        $region17: #{tpu_custom_call.1} parent=11 // pred_check
          %p272 = pneg %p205
        $region18: #{tpu_custom_call.1} parent=11 // pred_check_branch
          %274 = sbr.rel (%p272) target = $region20
        $region19: #{tpu_custom_call.1} parent=11 // pred_region
          _
        $region20: #{tpu_custom_call.1} parent=11 // pred_fallthru
          _
        // Predicated region
        $region21: #{tpu_custom_call.1} parent=11 // pred_check
          %p275 = pneg %p226
        $region22: #{tpu_custom_call.1} parent=11 // pred_check_branch
          %277 = sbr.rel (%p275) target = $region24
        $region23: #{tpu_custom_call.1} parent=11 // pred_region
          _
        $region24: #{tpu_custom_call.1} parent=11 // pred_fallthru
          _
      $region12: #{tpu_custom_call.1} parent=5 // pred_fallthru
        _
      %p278 = scmp.lt.s32.totalorder %s17, 2
      // Predicated region
      $region25: #{tpu_custom_call.1} parent=5 // pred_check
        %p279 = pneg %p278
      $region26: #{tpu_custom_call.1} parent=5 // pred_check_branch
        %281 = sbr.rel (%p279) target = $region28
      $region27: #{tpu_custom_call.1} parent=5 // pred_region
        // Predicated region
        $region29: #{tpu_custom_call.1} parent=27 // pred_check
          %p282 = pneg %p51
        $region30: #{tpu_custom_call.1} parent=27 // pred_check_branch
          %284 = sbr.rel (%p282) target = $region32
        $region31: #{tpu_custom_call.1} parent=27 // pred_region
          %p285 = scmp.lt.s32.totalorder %s24, 1
          %s286 = scalar_select %p285, %s24, 1
          %p287 = scmp.lt.s32.totalorder %s25, 0
          %s288 = scalar_select %p287, %s25, 0
          %s289 = smul.addr %s286, 4
          %s290 = sadd.s32 %s288, %s289
          %s291 = smul.addr %s290, 4
          %s292 = scalar_lea.vmem %s0, %s291
        $region32: #{tpu_custom_call.1} parent=27 // pred_fallthru
          _
        // Predicated region
        $region33: #{tpu_custom_call.1} parent=27 // pred_check
          %p293 = pneg %p77
        $region34: #{tpu_custom_call.1} parent=27 // pred_check_branch
          %295 = sbr.rel (%p293) target = $region36
        $region35: #{tpu_custom_call.1} parent=27 // pred_region
          %p296 = scmp.lt.s32.totalorder %s24, 1
          %s297 = scalar_select %p296, %s24, 1
          %s298 = smul.addr %s297, 8
          %s299 = smul.addr %s298, 4
          %s300 = scalar_lea.vmem %s1, %s299
        $region36: #{tpu_custom_call.1} parent=27 // pred_fallthru
          _
        // Predicated region
        $region37: #{tpu_custom_call.1} parent=27 // pred_check
          %p301 = pneg %p103
        $region38: #{tpu_custom_call.1} parent=27 // pred_check_branch
          %303 = sbr.rel (%p301) target = $region40
        $region39: #{tpu_custom_call.1} parent=27 // pred_region
          %p304 = scmp.lt.s32.totalorder %s24, 1
          %s305 = scalar_select %p304, %s24, 1
          %s306 = smul.addr %s305, 4
          %s307 = smul.addr %s306, 4
          %s308 = scalar_lea.vmem %s2, %s307
        $region40: #{tpu_custom_call.1} parent=27 // pred_fallthru
          _
        // Predicated region
        $region41: #{tpu_custom_call.1} parent=27 // pred_check
          %p309 = pneg %p131
        $region42: #{tpu_custom_call.1} parent=27 // pred_check_branch
          %311 = sbr.rel (%p309) target = $region44
        $region43: #{tpu_custom_call.1} parent=27 // pred_region
          %p312 = scmp.lt.s32.totalorder %s24, 1
          %s313 = scalar_select %p312, %s24, 1
          %p314 = scmp.lt.s32.totalorder %s25, 0
          %s315 = scalar_select %p314, %s25, 0
          %s316 = sadd.s32 %s315, %s313
          %s317 = smul.addr %s316, 8
          %s318 = scalar_lea.vmem %s3, %s317
        $region44: #{tpu_custom_call.1} parent=27 // pred_fallthru
          _
        // Predicated region
        $region45: #{tpu_custom_call.1} parent=27 // pred_check
          %p319 = pneg %p157
        $region46: #{tpu_custom_call.1} parent=27 // pred_check_branch
          %321 = sbr.rel (%p319) target = $region48
        $region47: #{tpu_custom_call.1} parent=27 // pred_region
          %p322 = scmp.lt.s32.totalorder %s24, 1
          %s323 = scalar_select %p322, %s24, 1
          %s324 = scalar_lea.vmem %s4, %s323
        $region48: #{tpu_custom_call.1} parent=27 // pred_fallthru
          _
      $region28: #{tpu_custom_call.1} parent=5 // pred_fallthru
        _
      %p325 = scmp.le.s32.totalorder 1, %s17
      %p326 = scmp.lt.s32.totalorder %s17, 3
      %p327 = pnand %p325, %p326
      %p328 = pneg %p327
      // Predicated region
      $region49: #{tpu_custom_call.1} parent=5 // pred_check
        _
      $region50: #{tpu_custom_call.1} parent=5 // pred_check_branch
        %330 = sbr.rel (%p327) target = $region52
      $region51: #{tpu_custom_call.1} parent=5 // pred_region
        %s331 = ssub.s32 %s17, 1
        %p332 = scmp.lt.s32.totalorder %s26, 1
        %s333 = scalar_select %p332, %s26, 1
        %p334 = scmp.lt.s32.totalorder %s27, 0
        %s335 = scalar_select %p334, %s27, 0
        %s336 = smul.addr %s333, 4
        %s337 = sadd.s32 %s335, %s336
        %s338 = smul.addr %s337, 4
        %s339 = scalar_lea.vmem %s0, %s338
        %p340 = pneg %p57
        %p341 = pneg %p54
        %p342 = scmp.lt.s32.totalorder %s26, 1
        %s343 = scalar_select %p342, %s26, 1
        %s344 = smul.addr %s343, 8
        %s345 = smul.addr %s344, 4
        %s346 = scalar_lea.vmem %s1, %s345
        %p347 = pneg %p83
        %p348 = pneg %p80
        %p349 = scmp.lt.s32.totalorder %s26, 1
        %s350 = scalar_select %p349, %s26, 1
        %s351 = smul.addr %s350, 4
        %s352 = smul.addr %s351, 4
        %s353 = scalar_lea.vmem %s2, %s352
        %p354 = pneg %p109
        %p355 = pneg %p106
        %p356 = scmp.lt.s32.totalorder %s26, 1
        %s357 = scalar_select %p356, %s26, 1
        %p358 = scmp.lt.s32.totalorder %s27, 0
        %s359 = scalar_select %p358, %s27, 0
        %s360 = sadd.s32 %s359, %s357
        %s361 = smul.addr %s360, 8
        %s362 = scalar_lea.vmem %s3, %s361
        %p363 = pneg %p137
        %p364 = pneg %p134
        %p365 = scmp.lt.s32.totalorder %s26, 1
        %s366 = scalar_select %p365, %s26, 1
        %s367 = scalar_lea.vmem %s4, %s366
        %p368 = pneg %p163
        %p369 = pneg %p160
        %p370 = pneg %p184
        %p371 = pneg %p181
        %p372 = pneg %p205
        %p373 = pneg %p202
        %p374 = pneg %p226
        %p375 = pneg %p223
        %p376 = pneg %p254
        %p377 = pneg %p251
        %s378 = sand.u32 %s241, 1
        %s379 = scalar_lea.sflag [#allocation3], %s378
        %s380 = sand.u32 %s241, 1
        %s381 = smul.addr %s380, 8
        %s382 = scalar_lea.vmem [#allocation2], %s381
        %p383 = scmp.lt.s32.totalorder %s26, 1
        %s384 = scalar_select %p383, %s26, 1
        %p385 = scmp.lt.s32.totalorder %s27, 0
        %s386 = scalar_select %p385, %s27, 0
        %s387 = smul.addr %s384, 4
        %s388 = sadd.s32 %s386, %s387
        %s389 = smul.addr %s388, 4
        %s390 = scalar_lea.vmem %s0, %s389
        %p391 = scmp.lt.s32.totalorder %s26, 1
        %s392 = scalar_select %p391, %s26, 1
        %s393 = smul.addr %s392, 8
        %s394 = smul.addr %s393, 4
        %s395 = scalar_lea.vmem %s1, %s394
        %p396 = scmp.lt.s32.totalorder %s26, 1
        %s397 = scalar_select %p396, %s26, 1
        %s398 = smul.addr %s397, 4
        %s399 = smul.addr %s398, 4
        %s400 = scalar_lea.vmem %s2, %s399
        %p401 = scmp.lt.s32.totalorder %s26, 1
        %s402 = scalar_select %p401, %s26, 1
        %p403 = scmp.lt.s32.totalorder %s27, 0
        %s404 = scalar_select %p403, %s27, 0
        %s405 = sadd.s32 %s404, %s402
        %s406 = smul.addr %s405, 8
        %s407 = scalar_lea.vmem %s3, %s406
        %p408 = scmp.lt.s32.totalorder %s26, 1
        %s409 = scalar_select %p408, %s26, 1
        %s410 = scalar_lea.vmem %s4, %s409
        %v412 = vld [vmem:[%s407] sm:$0xff]
        %v413 = vld [vmem:[%s410] sm:$0x1]
        %v414 = vld [vmem:[%s5] sm:$0x1]
        %416 = vset.pattern.permute.xlu0 0
        %417 = vperm.xlu0 %416, %v412
        %v418 = vpop.permute.xlu0 %417
        %v421 = vperm.slane %v413, 0
        %v423 = vmul.f32 %v418, %v421
        %v424 = vsub.f32 1.0, %v412
        %426 = vset.pattern.permute.xlu0 0
        %427 = vperm.xlu0 %426, %v424
        %v428 = vpop.permute.xlu0 %427
        %v431 = vperm.slane %v414, 0
        %v433 = vmul.f32 %v428, %v431
        %v434 = vadd.f32 %v423, %v433
        %v435 = vld [vmem:[%s390] sm:$0xf]
        %v436 = vld [vmem:[%s395] sm:$0xf]
        %v437 = vld [vmem:[%s395 + $0x4] sm:$0xf]
        %v438 = vld [vmem:[%s400] sm:$0xf]
        %v441 = vunpack.c.l.b16 %v436
        %v442 = vunpack.c.l.b16 %v437
        %v443 = vpack.c.b16 %v442, %v441
        %vm445 = vcmask 130048
        %v447 = vsel %vm445, %v435, 0
        %449 = vmatpush.bf16.msra.mxu0 0
        %450 = vmatpush.bf16.msra.mxu0 0
        %451 = vmatpush.bf16.msra.mxu0 0
        %452 = vmatpush.bf16.msra.mxu0 0
        %453 = vmatpush.bf16.msra.mxu0 0
        %454 = vmatpush.bf16.msra.mxu0 0
        %455 = vmatpush.bf16.msra.mxu0 0
        %456 = vmatpush.bf16.msra.mxu0 %v443
        %457 = vmatmul.bf16.gmra.mxu0 %v447
        %v458 = vpop.f32.mrf.mxu0
        %v459 = vadd.f32 0.0, %v458
        %v460 = vpop.f32.mrf.mxu0
        %461 = vdwg.mxu0
        %vm462 = vcmask 64512
        %v463 = vsel %vm462, %v459, -inf
        %464 = vmax.xlane.f32.xlu0 %v463
        %v465 = vpop.xlane.xlu0 %464
        %v466 = vsub.f32 %v459, %v465
        %v467 = vmul.f32 %v466, 1.442695
        %v468 = vpow.pop %v467
        %v469 = vmul.f32 %v468, %v434
        %v470 = vsel %vm462, %v469, 0.0
        %471 = vadd.xlane.f32.xlu0 %v470
        %v472 = vpop.xlane.xlu0 %471
        %v473 = vpack.c.bf16 %v469, %v469
        %v475 = vsel %vm462, %v473, 0
        %vm477 = vcmask 1043456
        %v479 = vsel %vm477, %v438, 0
        %481 = vmatpush.bf16.msra.mxu0 0
        %482 = vmatpush.bf16.msra.mxu0 0
        %483 = vmatpush.bf16.msra.mxu0 0
        %484 = vmatpush.bf16.msra.mxu0 0
        %485 = vmatpush.bf16.msra.mxu0 0
        %486 = vmatpush.bf16.msra.mxu0 0
        %487 = vmatpush.bf16.msra.mxu0 0
        %488 = vmatpush.bf16.msra.mxu0 %v479
        %489 = vmatmul.bf16.gmra.mxu0 %v475
        %v490 = vpop.f32.mrf.mxu0
        %v491 = vadd.f32 0.0, %v490
        %v492 = vpop.f32.mrf.mxu0
        %493 = vdwg.mxu0
        %v494 = vmax.f32 %v472, 1e-30
        %v495 = vrcp.pop %v494
        %v496 = vmul.f32 %v491, %v495
        %s497 = scalar_lea.vmem %s390, 4
        %v498 = vld [vmem:[%s497] sm:$0xf]
        %s499 = scalar_lea.vmem %s395, 8
        %v500 = vld [vmem:[%s499] sm:$0xf]
        %v501 = vld [vmem:[%s499 + $0x4] sm:$0xf]
        %s502 = scalar_lea.vmem %s400, 4
        %v503 = vld [vmem:[%s502] sm:$0xf]
        %v506 = vunpack.c.l.b16 %v500
        %v507 = vunpack.c.l.b16 %v501
        %v508 = vpack.c.b16 %v507, %v506
        %v511 = vsel %vm445, %v498, 0
        %513 = vmatpush.bf16.msra.mxu0 0
        %514 = vmatpush.bf16.msra.mxu0 0
        %515 = vmatpush.bf16.msra.mxu0 0
        %516 = vmatpush.bf16.msra.mxu0 0
        %517 = vmatpush.bf16.msra.mxu0 0
        %518 = vmatpush.bf16.msra.mxu0 0
        %519 = vmatpush.bf16.msra.mxu0 0
        %520 = vmatpush.bf16.msra.mxu0 %v508
        %521 = vmatmul.bf16.gmra.mxu0 %v511
        %v522 = vpop.f32.mrf.mxu0
        %v523 = vadd.f32 0.0, %v522
        %v524 = vpop.f32.mrf.mxu0
        %525 = vdwg.mxu0
        %v526 = vsel %vm462, %v523, -inf
        %527 = vmax.xlane.f32.xlu0 %v526
        %v528 = vpop.xlane.xlu0 %527
        %v529 = vsub.f32 %v523, %v528
        %v530 = vmul.f32 %v529, 1.442695
        %v531 = vpow.pop %v530
        %v532 = vmul.f32 %v531, %v434
        %v533 = vsel %vm462, %v532, 0.0
        %534 = vadd.xlane.f32.xlu0 %v533
        %v535 = vpop.xlane.xlu0 %534
        %v536 = vpack.c.bf16 %v532, %v532
        %v538 = vsel %vm462, %v536, 0
        %v541 = vsel %vm477, %v503, 0
        %543 = vmatpush.bf16.msra.mxu0 0
        %544 = vmatpush.bf16.msra.mxu0 0
        %545 = vmatpush.bf16.msra.mxu0 0
        %546 = vmatpush.bf16.msra.mxu0 0
        %547 = vmatpush.bf16.msra.mxu0 0
        %548 = vmatpush.bf16.msra.mxu0 0
        %549 = vmatpush.bf16.msra.mxu0 0
        %550 = vmatpush.bf16.msra.mxu0 %v541
        %551 = vmatmul.bf16.gmra.mxu0 %v538
        %v552 = vpop.f32.mrf.mxu0
        %v553 = vadd.f32 0.0, %v552
        %v554 = vpop.f32.mrf.mxu0
        %555 = vdwg.mxu0
        %v556 = vmax.f32 %v535, 1e-30
        %v557 = vrcp.pop %v556
        %v558 = vmul.f32 %v553, %v557
        %s559 = scalar_lea.vmem %s390, 8
        %v560 = vld [vmem:[%s559] sm:$0xf]
        %s561 = scalar_lea.vmem %s395, 16
        %v562 = vld [vmem:[%s561] sm:$0xf]
        %v563 = vld [vmem:[%s561 + $0x4] sm:$0xf]
        %s564 = scalar_lea.vmem %s400, 8
        %v565 = vld [vmem:[%s564] sm:$0xf]
        %v568 = vunpack.c.l.b16 %v562
        %v569 = vunpack.c.l.b16 %v563
        %v570 = vpack.c.b16 %v569, %v568
        %v573 = vsel %vm445, %v560, 0
        %575 = vmatpush.bf16.msra.mxu0 0
        %576 = vmatpush.bf16.msra.mxu0 0
        %577 = vmatpush.bf16.msra.mxu0 0
        %578 = vmatpush.bf16.msra.mxu0 0
        %579 = vmatpush.bf16.msra.mxu0 0
        %580 = vmatpush.bf16.msra.mxu0 0
        %581 = vmatpush.bf16.msra.mxu0 0
        %582 = vmatpush.bf16.msra.mxu0 %v570
        %583 = vmatmul.bf16.gmra.mxu0 %v573
        %v584 = vpop.f32.mrf.mxu0
        %v585 = vadd.f32 0.0, %v584
        %v586 = vpop.f32.mrf.mxu0
        %587 = vdwg.mxu0
        %v588 = vsel %vm462, %v585, -inf
        %589 = vmax.xlane.f32.xlu0 %v588
        %v590 = vpop.xlane.xlu0 %589
        %v591 = vsub.f32 %v585, %v590
        %v592 = vmul.f32 %v591, 1.442695
        %v593 = vpow.pop %v592
        %v594 = vmul.f32 %v593, %v434
        %v595 = vsel %vm462, %v594, 0.0
        %596 = vadd.xlane.f32.xlu0 %v595
        %v597 = vpop.xlane.xlu0 %596
        %v598 = vpack.c.bf16 %v594, %v594
        %v600 = vsel %vm462, %v598, 0
        %v603 = vsel %vm477, %v565, 0
        %605 = vmatpush.bf16.msra.mxu0 0
        %606 = vmatpush.bf16.msra.mxu0 0
        %607 = vmatpush.bf16.msra.mxu0 0
        %608 = vmatpush.bf16.msra.mxu0 0
        %609 = vmatpush.bf16.msra.mxu0 0
        %610 = vmatpush.bf16.msra.mxu0 0
        %611 = vmatpush.bf16.msra.mxu0 0
        %612 = vmatpush.bf16.msra.mxu0 %v603
        %613 = vmatmul.bf16.gmra.mxu0 %v600
        %v614 = vpop.f32.mrf.mxu0
        %v615 = vadd.f32 0.0, %v614
        %v616 = vpop.f32.mrf.mxu0
        %617 = vdwg.mxu0
        %v618 = vmax.f32 %v597, 1e-30
        %v619 = vrcp.pop %v618
        %v620 = vmul.f32 %v615, %v619
        %s621 = scalar_lea.vmem %s390, 12
        %v622 = vld [vmem:[%s621] sm:$0xf]
        %s623 = scalar_lea.vmem %s395, 24
        %v624 = vld [vmem:[%s623] sm:$0xf]
        %v625 = vld [vmem:[%s623 + $0x4] sm:$0xf]
        %s626 = scalar_lea.vmem %s400, 12
        %v627 = vld [vmem:[%s626] sm:$0xf]
        %v630 = vunpack.c.l.b16 %v624
        %v631 = vunpack.c.l.b16 %v625
        %v632 = vpack.c.b16 %v631, %v630
        %v635 = vsel %vm445, %v622, 0
        %637 = vmatpush.bf16.msra.mxu0 0
        %638 = vmatpush.bf16.msra.mxu0 0
        %639 = vmatpush.bf16.msra.mxu0 0
        %640 = vmatpush.bf16.msra.mxu0 0
        %641 = vmatpush.bf16.msra.mxu0 0
        %642 = vmatpush.bf16.msra.mxu0 0
        %643 = vmatpush.bf16.msra.mxu0 0
        %644 = vmatpush.bf16.msra.mxu0 %v632
        %645 = vmatmul.bf16.gmra.mxu0 %v635
        %v646 = vpop.f32.mrf.mxu0
        %v647 = vadd.f32 0.0, %v646
        %v648 = vpop.f32.mrf.mxu0
        %649 = vdwg.mxu0
        %v650 = vsel %vm462, %v647, -inf
        %651 = vmax.xlane.f32.xlu0 %v650
        %v652 = vpop.xlane.xlu0 %651
        %v653 = vsub.f32 %v647, %v652
        %v654 = vmul.f32 %v653, 1.442695
        %v655 = vpow.pop %v654
        %v656 = vmul.f32 %v655, %v434
        %v657 = vsel %vm462, %v656, 0.0
        %658 = vadd.xlane.f32.xlu0 %v657
        %v659 = vpop.xlane.xlu0 %658
        %v660 = vpack.c.bf16 %v656, %v656
        %v662 = vsel %vm462, %v660, 0
        %v665 = vsel %vm477, %v627, 0
        %667 = vmatpush.bf16.msra.mxu0 0
        %668 = vmatpush.bf16.msra.mxu0 0
        %669 = vmatpush.bf16.msra.mxu0 0
        %670 = vmatpush.bf16.msra.mxu0 0
        %671 = vmatpush.bf16.msra.mxu0 0
        %672 = vmatpush.bf16.msra.mxu0 0
        %673 = vmatpush.bf16.msra.mxu0 0
        %674 = vmatpush.bf16.msra.mxu0 %v665
        %675 = vmatmul.bf16.gmra.mxu0 %v662
        %v676 = vpop.f32.mrf.mxu0
        %v677 = vadd.f32 0.0, %v676
        %v678 = vpop.f32.mrf.mxu0
        %679 = vdwg.mxu0
        %v680 = vmax.f32 %v659, 1e-30
        %v681 = vrcp.pop %v680
        %v682 = vmul.f32 %v677, %v681
        %684 = vrot.lane.b32.xlu0 %v558, 16
        %v685 = vpop.permute.xlu0 %684
        %688 = vrot.lane.b32.xlu0 %v620, 32
        %v689 = vpop.permute.xlu0 %688
        %692 = vrot.lane.b32.xlu0 %v682, 48
        %v693 = vpop.permute.xlu0 %692
        %v695 = vsel %vm445, %v496, %v685
        %vm696 = vcmask 261120
        %v697 = vsel %vm696, %v695, %v689
        %vm698 = vcmask 392192
        %v699 = vsel %vm698, %v697, %v693
        %v700 = vld [vmem:[%s6] sm:$0xff]
        %v701 = vld [vmem:[%s6 + $0x8] sm:$0xff]
        %v702 = vld [vmem:[%s6 + $0x10] sm:$0xff]
        %v703 = vld [vmem:[%s6 + $0x18] sm:$0xff]
        %v704 = vld [vmem:[%s6 + $0x20] sm:$0xff]
        %v705 = vld [vmem:[%s6 + $0x28] sm:$0xff]
        %v706 = vld [vmem:[%s6 + $0x30] sm:$0xff]
        %v707 = vld [vmem:[%s6 + $0x38] sm:$0xff]
        %v708 = vld [vmem:[%s7] sm:$0x1]
        %v710 = vperm.slane %v708, 0
        %vm712 = vcmask 523264
        %v714 = vsel %vm712, %v699, 0
        %716 = vmatpush.msra.mxu0 0.0
        %717 = vmatpush.msra.mxu0 0.0
        %718 = vmatpush.msra.mxu0 0.0
        %719 = vmatpush.msra.mxu0 0.0
        %720 = vmatpush.msra.mxu0 0.0
        %721 = vmatpush.msra.mxu0 0.0
        %722 = vmatpush.msra.mxu0 0.0
        %723 = vmatpush.msra.mxu0 0.0
        %724 = vmatpush.msra.mxu0 %v707
        %725 = vmatpush.msra.mxu0 %v706
        %726 = vmatpush.msra.mxu0 %v705
        %727 = vmatpush.msra.mxu0 %v704
        %728 = vmatpush.msra.mxu0 %v703
        %729 = vmatpush.msra.mxu0 %v702
        %730 = vmatpush.msra.mxu0 %v701
        %731 = vmatpush.msra.mxu0 %v700
        %732 = vmatmul.f32.gmra.mxu0 %v714
        %v733 = vpop.f32.mrf.mxu0
        %v734 = vadd.f32 %v710, %v733
        %735 = vdwg.mxu0
        %736 = vst.msk [vmem:[%s382] sm:$0xff] %vm696, %v734
        %s737 = sand.u32 %s241, 1
        %s738 = scalar_lea.sflag [#allocation3], %s737
        %s739 = sand.u32 %s241, 1
        %s740 = smul.addr %s739, 8
        %s741 = scalar_lea.vmem [#allocation2], %s740
        // Predicated region
        $region53: #{tpu_custom_call.1} parent=51 // pred_check
          %p742 = pneg %p251
        $region54: #{tpu_custom_call.1} parent=51 // pred_check_branch
          %744 = sbr.rel (%p742) target = $region56
        $region55: #{tpu_custom_call.1} parent=51 // pred_region
          %746 = vsyncadd %s738, 0
          %s747 = sadd.s32 %s27, %s26
          %s748 = smul.addr %s747, 8
          %s749 = scalar_lea.hbm %s8, %s748
          %s751 = sshll.u32 %s741, 4
          %s752 = int_to_ptr.vmem [resolvable:$true] %s751
          %s753 = sshll.u32 %s749, 4
          %s754 = int_to_ptr.hbm [resolvable:$true] %s753
          %756 = dma.vmem_to_hbm [thread:$0]  %s752, 128, %s754, %s738
        $region56: #{tpu_custom_call.1} parent=51 // pred_fallthru
          _
      $region52: #{tpu_custom_call.1} parent=5 // pred_fallthru
        _
      %p757 = scmp.le.s32.totalorder 2, %s17
      // Predicated region
      $region57: #{tpu_custom_call.1} parent=5 // pred_check
        %p758 = pneg %p757
      $region58: #{tpu_custom_call.1} parent=5 // pred_check_branch
        %760 = sbr.rel (%p758) target = $region60
      $region59: #{tpu_custom_call.1} parent=5 // pred_region
        %s761 = ssub.s32 %s17, 2
        // Predicated region
        $region61: #{tpu_custom_call.1} parent=59 // pred_check
          %p762 = pneg %p257
        $region62: #{tpu_custom_call.1} parent=59 // pred_check_branch
          %764 = sbr.rel (%p762) target = $region64
        $region63: #{tpu_custom_call.1} parent=59 // pred_region
          %s765 = sand.u32 %s242, 1
          %s766 = scalar_lea.sflag [#allocation3], %s765
          %s767 = sand.u32 %s242, 1
          %s768 = smul.addr %s767, 8
          %s769 = scalar_lea.vmem [#allocation2], %s768
          %771 = dma.done %s766, 128
        $region64: #{tpu_custom_call.1} parent=59 // pred_fallthru
          _
      $region60: #{tpu_custom_call.1} parent=5 // pred_fallthru
        _
    $region6: #{tpu_custom_call.1} parent=1 // loop_footer
      %s21 = sadd.s32 1, %s17
    $region7: #{tpu_custom_call.1} parent=1 // loop_footer_branch
      %16 = sbr.rel target = $region3
    $region8: #{tpu_custom_call.1} parent=1 // loop_exit
      _
    %772 = vsyncpa [#allocation3], 1
    %s773 = scalar_lea.sflag [#allocation3], 1
    %774 = vsyncpa %s773, 1

</llo_original>
